<compile_context>
chip_gen: v5e
topology: v5e:2x2
jax: 0.10.0
libtpu: 0.0.40
codegen_flags: <defaults>
</compile_context>

<pallas_src>
import jax
import jax.numpy as jnp
from jax.experimental import pallas as pl
from jax.experimental.pallas import tpu as pltpu


def _make_unet_up_kernel(H, W):
    Wp = W + 2                       # padded row width (1 left + 1 right)
    HWp = H * Wp                     # matmul free (lane) dim per parity
    inv_n = 1.0 / float(4 * H * W)   # InstanceNorm averages over the 2H x 2W output

    def kernel(x_ref, w_ref, mask_ref, out_ref):
        # x_ref:    (1, Cin, (H+2)*(W+2)+2)  bf16  flattened 1-padded input
        # w_ref:    (4, Cout, 4*Cin)         bf16  per-parity fused-tap weights
        # mask_ref: (1, HWp)                 f32   1.0 on valid columns, 0.0 on junk
        # out_ref:  (1, 4, Cout, HWp)        f32   parity-major, un-interleaved
        Cout = w_ref.shape[1]

        xv = x_ref[0]                # (Cin, L) bf16
        wv = w_ref[...]              # (4, Cout, 4*Cin) bf16
        mask = mask_ref[...]         # (1, HWp) f32

        # The 16 (parity, tap) combinations only need 9 distinct shifted slabs.
        slabs = [[xv[:, a * Wp + b: a * Wp + b + HWp] for b in range(3)]
                 for a in range(3)]  # each (Cin, HWp) bf16

        s_sum = jnp.zeros((Cout, 1), jnp.float32)
        s_sq = jnp.zeros((Cout, 1), jnp.float32)
        for py in range(2):
            for px in range(2):
                p = 2 * py + px
                # Fused K = 4*Cin contraction: one MXU push per output parity.
                patch = jnp.concatenate(
                    [slabs[py + dy][px + dx] for dy in range(2) for dx in range(2)],
                    axis=0)                                          # (4*Cin, HWp)
                y = jnp.dot(wv[p], patch,
                            preferred_element_type=jnp.float32)      # (Cout, HWp) f32
                ym = y * mask                                        # junk cols -> 0
                s_sum = s_sum + jnp.sum(ym, axis=1, keepdims=True)
                s_sq = s_sq + jnp.sum(ym * y, axis=1, keepdims=True)
                out_ref[0, p] = y        # stage un-normalized y in the VMEM out block

        # InstanceNorm2d (affine=False, track_running_stats=False): per-channel
        # stats over the full 2H x 2W output (all 4 parities), biased var, eps=1e-5.
        mean = s_sum * inv_n
        var = jnp.maximum(s_sq * inv_n - mean * mean, 0.0)
        inv_std = jax.lax.rsqrt(var + 1e-5)   # EUP slot, co-issues with VPU work
        for p in range(4):
            y = out_ref[0, p]
            out_ref[0, p] = jnp.maximum((y - mean) * inv_std, 0.0)   # norm + ReLU

    return kernel


def unet_up(x_nchw, skip_nchw, w_pt):
    """UNetUp.forward: ConvTranspose2d(4,2,1,bias=False) -> InstanceNorm2d -> ReLU
    -> torch.cat((., skip), dim=1).
      x_nchw:    (N, Cin, H, W)
      skip_nchw: (N, Cs, 2H, 2W)
      w_pt:      ConvTranspose2d weight, PyTorch layout (Cin, Cout, 4, 4)
    Returns (N, Cout + Cs, 2H, 2W) float32 (NCHW)."""
    N, Cin, H, W = x_nchw.shape
    Cout = w_pt.shape[1]
    H2, W2 = 2 * H, 2 * W
    Hp, Wp = H + 2, W + 2
    HWp = H * Wp
    L = Hp * Wp + 2              # +2 so the largest tap offset stays in bounds

    # ---- glue: flattened, 1-padded, bf16 input (spatial on the lane axis) ----
    xp = jnp.pad(x_nchw.astype(jnp.float32), ((0, 0), (0, 0), (1, 1), (1, 1)))
    x_flat = jnp.pad(xp.reshape(N, Cin, Hp * Wp), ((0, 0), (0, 0), (0, 2)))
    x_flat = x_flat.astype(jnp.bfloat16)

    # ---- glue: per-parity fused-tap weights (parity-major, K ordered (dy,dx,ci)) ----
    # out[co, 2m+py, 2n+px] = sum_{dy,dx,ci} xpad[ci, m+py+dy, n+px+dx]
    #                                        * w[ci, co, 3-py-2dy, 3-px-2dx]
    w_oihw = jnp.transpose(w_pt, (1, 0, 2, 3)).astype(jnp.float32)   # (Cout, Cin, 4, 4)
    blocks = []
    for py in range(2):
        for px in range(2):
            taps = [w_oihw[:, :, 3 - py - 2 * dy, 3 - px - 2 * dx]
                    for dy in range(2) for dx in range(2)]           # each (Cout, Cin)
            blocks.append(jnp.concatenate(taps, axis=1))             # (Cout, 4*Cin)
    w_k = jnp.stack(blocks, axis=0).astype(jnp.bfloat16)             # (4, Cout, 4*Cin)

    # ---- glue: lane mask for the stats (last 2 columns of each row are junk) ----
    mask = jnp.tile((jnp.arange(Wp) < W).astype(jnp.float32), H).reshape(1, HWp)

    kernel = _make_unet_up_kernel(H, W)
    # TODO(synk): for production-size UNet feature maps add a spatial row-band grid
    # axis (two-pass InstanceNorm with a stats scratch) and set vmem_limit_bytes so
    # the blocks fit v7x's 64 MiB VMEM; whole-image-per-batch blocks are fine here.
    y = pl.pallas_call(
        kernel,
        out_shape=jax.ShapeDtypeStruct((N, 4, Cout, HWp), jnp.float32),
        grid=(N,),
        in_specs=[
            pl.BlockSpec((1, Cin, L), lambda n: (n, 0, 0)),
            pl.BlockSpec((4, Cout, 4 * Cin), lambda n: (0, 0, 0)),
            pl.BlockSpec((1, HWp), lambda n: (0, 0)),
        ],
        out_specs=pl.BlockSpec((1, 4, Cout, HWp), lambda n: (n, 0, 0, 0)),
        compiler_params=pltpu.CompilerParams(dimension_semantics=("parallel",)),
    )(x_flat, w_k, mask)

    # ---- glue: drop junk columns, interleave the 4 parities back into NCHW ----
    y = y.reshape(N, 2, 2, Cout, H, Wp)[..., :W]           # (N, py, px, Cout, H, W)
    y = jnp.transpose(y, (0, 3, 4, 1, 5, 2)).reshape(N, Cout, H2, W2)

    # ---- channel concat with skip: plain contiguous XLA copy, not in-kernel ----
    return jnp.concatenate([y, skip_nchw.astype(jnp.float32)], axis=1)


def ref_unet_up(x_nchw, skip_nchw, w_pt):
    """Pure-JAX reference of UNetUp.forward (f32, HIGHEST precision)."""
    w_conv = jnp.flip(jnp.transpose(w_pt, (1, 0, 2, 3)), axis=(2, 3))  # OIHW, flipped
    y = jax.lax.conv_general_dilated(
        x_nchw.astype(jnp.float32), w_conv.astype(jnp.float32),
        window_strides=(1, 1), padding=((2, 2), (2, 2)), lhs_dilation=(2, 2),
        dimension_numbers=("NCHW", "OIHW", "NCHW"),
        precision=jax.lax.Precision.HIGHEST)
    mean = jnp.mean(y, axis=(2, 3), keepdims=True)
    var = jnp.mean((y - mean) ** 2, axis=(2, 3), keepdims=True)
    y = jnp.maximum((y - mean) / jnp.sqrt(var + 1e-5), 0.0)
    return jnp.concatenate([y, skip_nchw.astype(jnp.float32)], axis=1)


if __name__ == "__main__":
    key = jax.random.PRNGKey(0)
    k_x, k_skip, k_w = jax.random.split(key, 3)

    # Small UNetUp instance: in_size=4, out_size=8, input spatial 16 -> output 32.
    N, Cin, Cout, H, W = 2, 4, 8, 16, 16
    x = jax.random.normal(k_x, (N, Cin, H, W), jnp.float32)
    skip = jax.random.normal(k_skip, (N, Cout, 2 * H, 2 * W), jnp.float32)
    # ConvTranspose2d weight, PyTorch layout (in_size, out_size, 4, 4).
    w_pt = 0.1 * jax.random.normal(k_w, (Cin, Cout, 4, 4), jnp.float32)

    out = jax.block_until_ready(unet_up(x, skip, w_pt))
    assert out.shape == (N, 2 * Cout, 2 * H, 2 * W), out.shape

    ref = ref_unet_up(x, skip, w_pt)
    # Kernel uses bf16 matmul operands with f32 accumulation; reference is f32 HIGHEST.
    if not jnp.allclose(out, ref, atol=2e-2, rtol=2e-2):
        max_err = float(jnp.max(jnp.abs(out - ref)))
        raise AssertionError(f"Pallas kernel mismatch vs reference, max_err={max_err}")

    print("KERNEL_OK")
</pallas_src>

<mosaic_0001>
module attributes {stable_mosaic.version = 11 : i64} {
  func.func @kernel(%arg0: i32, %arg1: memref<1x4x326xbf16, #tpu.memory_space<vmem>>, %arg2: memref<4x8x16xbf16, #tpu.memory_space<vmem>>, %arg3: memref<1x288xf32, #tpu.memory_space<vmem>>, %arg4: memref<1x4x8x288xf32, #tpu.memory_space<vmem>>) attributes {dimension_semantics = [#tpu.dimension_semantics<parallel>], iteration_bounds = array<i64: 2>, scalar_prefetch = 0 : i64, scratch_operands = 0 : i64, tpu.core_type = #tpu.core_type<tc>, window_params = [{transform_indices = @transform_0, window_bounds = array<i64: 1, 4, 326>}, {pipeline_mode = #tpu.pipeline_mode<synchronous>, transform_indices = @transform_1, window_bounds = array<i64: 4, 8, 16>}, {pipeline_mode = #tpu.pipeline_mode<synchronous>, transform_indices = @transform_2, window_bounds = array<i64: 1, 288>}, {transform_indices = @transform_3, window_bounds = array<i64: 1, 4, 8, 288>}]} {
    %c0 = arith.constant 0 : index
    %c0_0 = arith.constant 0 : index
    %c0_1 = arith.constant 0 : index
    %0 = vector.load %arg1[%c0, %c0_0, %c0_1] : memref<1x4x326xbf16, #tpu.memory_space<vmem>>, vector<1x4x326xbf16>
    %1 = vector.shape_cast %0 : vector<1x4x326xbf16> to vector<4x326xbf16>
    %c0_2 = arith.constant 0 : index
    %c0_3 = arith.constant 0 : index
    %c0_4 = arith.constant 0 : index
    %2 = vector.load %arg2[%c0_2, %c0_3, %c0_4] : memref<4x8x16xbf16, #tpu.memory_space<vmem>>, vector<4x8x16xbf16>
    %c0_5 = arith.constant 0 : index
    %c0_6 = arith.constant 0 : index
    %3 = vector.load %arg3[%c0_5, %c0_6] : memref<1x288xf32, #tpu.memory_space<vmem>>, vector<1x288xf32>
    %4 = vector.extract_strided_slice %1 {offsets = [0, 0], sizes = [4, 288], strides = [1, 1]} : vector<4x326xbf16> to vector<4x288xbf16>
    %5 = vector.extract_strided_slice %1 {offsets = [0, 1], sizes = [4, 288], strides = [1, 1]} : vector<4x326xbf16> to vector<4x288xbf16>
    %6 = vector.extract_strided_slice %1 {offsets = [0, 2], sizes = [4, 288], strides = [1, 1]} : vector<4x326xbf16> to vector<4x288xbf16>
    %7 = vector.extract_strided_slice %1 {offsets = [0, 18], sizes = [4, 288], strides = [1, 1]} : vector<4x326xbf16> to vector<4x288xbf16>
    %8 = vector.extract_strided_slice %1 {offsets = [0, 19], sizes = [4, 288], strides = [1, 1]} : vector<4x326xbf16> to vector<4x288xbf16>
    %9 = vector.extract_strided_slice %1 {offsets = [0, 20], sizes = [4, 288], strides = [1, 1]} : vector<4x326xbf16> to vector<4x288xbf16>
    %10 = vector.extract_strided_slice %1 {offsets = [0, 36], sizes = [4, 288], strides = [1, 1]} : vector<4x326xbf16> to vector<4x288xbf16>
    %11 = vector.extract_strided_slice %1 {offsets = [0, 37], sizes = [4, 288], strides = [1, 1]} : vector<4x326xbf16> to vector<4x288xbf16>
    %12 = vector.extract_strided_slice %1 {offsets = [0, 38], sizes = [4, 288], strides = [1, 1]} : vector<4x326xbf16> to vector<4x288xbf16>
    %cst = arith.constant 0.000000e+00 : f32
    %13 = vector.broadcast %cst : f32 to vector<8x1xf32>
    %cst_7 = arith.constant 0.000000e+00 : f32
    %14 = vector.broadcast %cst_7 : f32 to vector<8x1xf32>
    %15 = tpu.concatenate %4, %5, %7, %8 in 0 : vector<4x288xbf16>, vector<4x288xbf16>, vector<4x288xbf16>, vector<4x288xbf16> -> vector<16x288xbf16>
    %16 = vector.extract_strided_slice %2 {offsets = [0, 0, 0], sizes = [1, 8, 16], strides = [1, 1, 1]} : vector<4x8x16xbf16> to vector<1x8x16xbf16>
    %17 = vector.shape_cast %16 : vector<1x8x16xbf16> to vector<8x16xbf16>
    %cst_8 = arith.constant dense<0.000000e+00> : vector<8x288xf32>
    %18 = tpu.matmul %17, %15, %cst_8 {dimension_numbers = #tpu.dot_dimension_numbers<[1], [0], [0], [1], [0, 0, 1, 1], [], []>} : vector<8x16xbf16>, vector<16x288xbf16>, vector<8x288xf32> -> vector<8x288xf32>
    %19 = vector.broadcast %3 : vector<1x288xf32> to vector<8x288xf32>
    %20 = arith.mulf %18, %19 : vector<8x288xf32>
    %cst_9 = arith.constant dense<0.000000e+00> : vector<8xf32>
    %21 = vector.multi_reduction <add>, %20, %cst_9 [1] : vector<8x288xf32> to vector<8xf32>
    %22 = vector.shape_cast %21 : vector<8xf32> to vector<8x1xf32>
    %23 = arith.addf %13, %22 : vector<8x1xf32>
    %24 = arith.mulf %20, %18 : vector<8x288xf32>
    %cst_10 = arith.constant dense<0.000000e+00> : vector<8xf32>
    %25 = vector.multi_reduction <add>, %24, %cst_10 [1] : vector<8x288xf32> to vector<8xf32>
    %26 = vector.shape_cast %25 : vector<8xf32> to vector<8x1xf32>
    %27 = arith.addf %14, %26 : vector<8x1xf32>
    %c0_11 = arith.constant 0 : index
    %c0_12 = arith.constant 0 : index
    %c0_13 = arith.constant 0 : index
    %c0_14 = arith.constant 0 : index
    %28 = vector.load %arg4[%c0_11, %c0_12, %c0_13, %c0_14] : memref<1x4x8x288xf32, #tpu.memory_space<vmem>>, vector<1x1x8x288xf32>
    %29 = vector.shape_cast %28 : vector<1x1x8x288xf32> to vector<8x288xf32>
    %30 = vector.shape_cast %18 : vector<8x288xf32> to vector<1x1x8x288xf32>
    tpu.vector_store %arg4[%c0_11, %c0_12, %c0_13, %c0_14], %30 {strides = array<i32>} : memref<1x4x8x288xf32, #tpu.memory_space<vmem>>, vector<1x1x8x288xf32>,
    %31 = tpu.concatenate %5, %6, %8, %9 in 0 : vector<4x288xbf16>, vector<4x288xbf16>, vector<4x288xbf16>, vector<4x288xbf16> -> vector<16x288xbf16>
    %32 = vector.extract_strided_slice %2 {offsets = [1, 0, 0], sizes = [1, 8, 16], strides = [1, 1, 1]} : vector<4x8x16xbf16> to vector<1x8x16xbf16>
    %33 = vector.shape_cast %32 : vector<1x8x16xbf16> to vector<8x16xbf16>
    %cst_15 = arith.constant dense<0.000000e+00> : vector<8x288xf32>
    %34 = tpu.matmul %33, %31, %cst_15 {dimension_numbers = #tpu.dot_dimension_numbers<[1], [0], [0], [1], [0, 0, 1, 1], [], []>} : vector<8x16xbf16>, vector<16x288xbf16>, vector<8x288xf32> -> vector<8x288xf32>
    %35 = vector.broadcast %3 : vector<1x288xf32> to vector<8x288xf32>
    %36 = arith.mulf %34, %35 : vector<8x288xf32>
    %cst_16 = arith.constant dense<0.000000e+00> : vector<8xf32>
    %37 = vector.multi_reduction <add>, %36, %cst_16 [1] : vector<8x288xf32> to vector<8xf32>
    %38 = vector.shape_cast %37 : vector<8xf32> to vector<8x1xf32>
    %39 = arith.addf %23, %38 : vector<8x1xf32>
    %40 = arith.mulf %36, %34 : vector<8x288xf32>
    %cst_17 = arith.constant dense<0.000000e+00> : vector<8xf32>
    %41 = vector.multi_reduction <add>, %40, %cst_17 [1] : vector<8x288xf32> to vector<8xf32>
    %42 = vector.shape_cast %41 : vector<8xf32> to vector<8x1xf32>
    %43 = arith.addf %27, %42 : vector<8x1xf32>
    %c0_18 = arith.constant 0 : index
    %c1 = arith.constant 1 : index
    %c0_19 = arith.constant 0 : index
    %c0_20 = arith.constant 0 : index
    %44 = vector.load %arg4[%c0_18, %c1, %c0_19, %c0_20] : memref<1x4x8x288xf32, #tpu.memory_space<vmem>>, vector<1x1x8x288xf32>
    %45 = vector.shape_cast %44 : vector<1x1x8x288xf32> to vector<8x288xf32>
    %46 = vector.shape_cast %34 : vector<8x288xf32> to vector<1x1x8x288xf32>
    tpu.vector_store %arg4[%c0_18, %c1, %c0_19, %c0_20], %46 {strides = array<i32>} : memref<1x4x8x288xf32, #tpu.memory_space<vmem>>, vector<1x1x8x288xf32>,
    %47 = tpu.concatenate %7, %8, %10, %11 in 0 : vector<4x288xbf16>, vector<4x288xbf16>, vector<4x288xbf16>, vector<4x288xbf16> -> vector<16x288xbf16>
    %48 = vector.extract_strided_slice %2 {offsets = [2, 0, 0], sizes = [1, 8, 16], strides = [1, 1, 1]} : vector<4x8x16xbf16> to vector<1x8x16xbf16>
    %49 = vector.shape_cast %48 : vector<1x8x16xbf16> to vector<8x16xbf16>
    %cst_21 = arith.constant dense<0.000000e+00> : vector<8x288xf32>
    %50 = tpu.matmul %49, %47, %cst_21 {dimension_numbers = #tpu.dot_dimension_numbers<[1], [0], [0], [1], [0, 0, 1, 1], [], []>} : vector<8x16xbf16>, vector<16x288xbf16>, vector<8x288xf32> -> vector<8x288xf32>
    %51 = vector.broadcast %3 : vector<1x288xf32> to vector<8x288xf32>
    %52 = arith.mulf %50, %51 : vector<8x288xf32>
    %cst_22 = arith.constant dense<0.000000e+00> : vector<8xf32>
    %53 = vector.multi_reduction <add>, %52, %cst_22 [1] : vector<8x288xf32> to vector<8xf32>
    %54 = vector.shape_cast %53 : vector<8xf32> to vector<8x1xf32>
    %55 = arith.addf %39, %54 : vector<8x1xf32>
    %56 = arith.mulf %52, %50 : vector<8x288xf32>
    %cst_23 = arith.constant dense<0.000000e+00> : vector<8xf32>
    %57 = vector.multi_reduction <add>, %56, %cst_23 [1] : vector<8x288xf32> to vector<8xf32>
    %58 = vector.shape_cast %57 : vector<8xf32> to vector<8x1xf32>
    %59 = arith.addf %43, %58 : vector<8x1xf32>
    %c0_24 = arith.constant 0 : index
    %c2 = arith.constant 2 : index
    %c0_25 = arith.constant 0 : index
    %c0_26 = arith.constant 0 : index
    %60 = vector.load %arg4[%c0_24, %c2, %c0_25, %c0_26] : memref<1x4x8x288xf32, #tpu.memory_space<vmem>>, vector<1x1x8x288xf32>
    %61 = vector.shape_cast %60 : vector<1x1x8x288xf32> to vector<8x288xf32>
    %62 = vector.shape_cast %50 : vector<8x288xf32> to vector<1x1x8x288xf32>
    tpu.vector_store %arg4[%c0_24, %c2, %c0_25, %c0_26], %62 {strides = array<i32>} : memref<1x4x8x288xf32, #tpu.memory_space<vmem>>, vector<1x1x8x288xf32>,
    %63 = tpu.concatenate %8, %9, %11, %12 in 0 : vector<4x288xbf16>, vector<4x288xbf16>, vector<4x288xbf16>, vector<4x288xbf16> -> vector<16x288xbf16>
    %64 = vector.extract_strided_slice %2 {offsets = [3, 0, 0], sizes = [1, 8, 16], strides = [1, 1, 1]} : vector<4x8x16xbf16> to vector<1x8x16xbf16>
    %65 = vector.shape_cast %64 : vector<1x8x16xbf16> to vector<8x16xbf16>
    %cst_27 = arith.constant dense<0.000000e+00> : vector<8x288xf32>
    %66 = tpu.matmul %65, %63, %cst_27 {dimension_numbers = #tpu.dot_dimension_numbers<[1], [0], [0], [1], [0, 0, 1, 1], [], []>} : vector<8x16xbf16>, vector<16x288xbf16>, vector<8x288xf32> -> vector<8x288xf32>
    %67 = vector.broadcast %3 : vector<1x288xf32> to vector<8x288xf32>
    %68 = arith.mulf %66, %67 : vector<8x288xf32>
    %cst_28 = arith.constant dense<0.000000e+00> : vector<8xf32>
    %69 = vector.multi_reduction <add>, %68, %cst_28 [1] : vector<8x288xf32> to vector<8xf32>
    %70 = vector.shape_cast %69 : vector<8xf32> to vector<8x1xf32>
    %71 = arith.addf %55, %70 : vector<8x1xf32>
    %72 = arith.mulf %68, %66 : vector<8x288xf32>
    %cst_29 = arith.constant dense<0.000000e+00> : vector<8xf32>
    %73 = vector.multi_reduction <add>, %72, %cst_29 [1] : vector<8x288xf32> to vector<8xf32>
    %74 = vector.shape_cast %73 : vector<8xf32> to vector<8x1xf32>
    %75 = arith.addf %59, %74 : vector<8x1xf32>
    %c0_30 = arith.constant 0 : index
    %c3 = arith.constant 3 : index
    %c0_31 = arith.constant 0 : index
    %c0_32 = arith.constant 0 : index
    %76 = vector.load %arg4[%c0_30, %c3, %c0_31, %c0_32] : memref<1x4x8x288xf32, #tpu.memory_space<vmem>>, vector<1x1x8x288xf32>
    %77 = vector.shape_cast %76 : vector<1x1x8x288xf32> to vector<8x288xf32>
    %78 = vector.shape_cast %66 : vector<8x288xf32> to vector<1x1x8x288xf32>
    tpu.vector_store %arg4[%c0_30, %c3, %c0_31, %c0_32], %78 {strides = array<i32>} : memref<1x4x8x288xf32, #tpu.memory_space<vmem>>, vector<1x1x8x288xf32>,
    %cst_33 = arith.constant 9.765625E-4 : f32
    %79 = vector.broadcast %cst_33 : f32 to vector<8x1xf32>
    %80 = arith.mulf %71, %79 : vector<8x1xf32>
    %cst_34 = arith.constant 9.765625E-4 : f32
    %81 = vector.broadcast %cst_34 : f32 to vector<8x1xf32>
    %82 = arith.mulf %75, %81 : vector<8x1xf32>
    %83 = arith.mulf %80, %80 : vector<8x1xf32>
    %84 = arith.subf %82, %83 : vector<8x1xf32>
    %cst_35 = arith.constant 0.000000e+00 : f32
    %85 = vector.broadcast %cst_35 : f32 to vector<8x1xf32>
    %86 = arith.maximumf %84, %85 : vector<8x1xf32>
    %cst_36 = arith.constant 9.99999974E-6 : f32
    %87 = vector.broadcast %cst_36 : f32 to vector<8x1xf32>
    %88 = arith.addf %86, %87 : vector<8x1xf32>
    %89 = math.rsqrt %88 : vector<8x1xf32>
    %c0_37 = arith.constant 0 : index
    %c0_38 = arith.constant 0 : index
    %c0_39 = arith.constant 0 : index
    %c0_40 = arith.constant 0 : index
    %90 = vector.load %arg4[%c0_37, %c0_38, %c0_39, %c0_40] : memref<1x4x8x288xf32, #tpu.memory_space<vmem>>, vector<1x1x8x288xf32>
    %91 = vector.shape_cast %90 : vector<1x1x8x288xf32> to vector<8x288xf32>
    %92 = vector.broadcast %80 : vector<8x1xf32> to vector<8x288xf32>
    %93 = arith.subf %91, %92 : vector<8x288xf32>
    %94 = vector.broadcast %89 : vector<8x1xf32> to vector<8x288xf32>
    %95 = arith.mulf %93, %94 : vector<8x288xf32>
    %cst_41 = arith.constant 0.000000e+00 : f32
    %96 = vector.broadcast %cst_41 : f32 to vector<8x288xf32>
    %97 = arith.maximumf %95, %96 : vector<8x288xf32>
    %c0_42 = arith.constant 0 : index
    %c0_43 = arith.constant 0 : index
    %c0_44 = arith.constant 0 : index
    %c0_45 = arith.constant 0 : index
    %98 = vector.load %arg4[%c0_42, %c0_43, %c0_44, %c0_45] : memref<1x4x8x288xf32, #tpu.memory_space<vmem>>, vector<1x1x8x288xf32>
    %99 = vector.shape_cast %98 : vector<1x1x8x288xf32> to vector<8x288xf32>
    %100 = vector.shape_cast %97 : vector<8x288xf32> to vector<1x1x8x288xf32>
    tpu.vector_store %arg4[%c0_42, %c0_43, %c0_44, %c0_45], %100 {strides = array<i32>} : memref<1x4x8x288xf32, #tpu.memory_space<vmem>>, vector<1x1x8x288xf32>,
    %c0_46 = arith.constant 0 : index
    %c1_47 = arith.constant 1 : index
    %c0_48 = arith.constant 0 : index
    %c0_49 = arith.constant 0 : index
    %101 = vector.load %arg4[%c0_46, %c1_47, %c0_48, %c0_49] : memref<1x4x8x288xf32, #tpu.memory_space<vmem>>, vector<1x1x8x288xf32>
    %102 = vector.shape_cast %101 : vector<1x1x8x288xf32> to vector<8x288xf32>
    %103 = vector.broadcast %80 : vector<8x1xf32> to vector<8x288xf32>
    %104 = arith.subf %102, %103 : vector<8x288xf32>
    %105 = vector.broadcast %89 : vector<8x1xf32> to vector<8x288xf32>
    %106 = arith.mulf %104, %105 : vector<8x288xf32>
    %cst_50 = arith.constant 0.000000e+00 : f32
    %107 = vector.broadcast %cst_50 : f32 to vector<8x288xf32>
    %108 = arith.maximumf %106, %107 : vector<8x288xf32>
    %c0_51 = arith.constant 0 : index
    %c1_52 = arith.constant 1 : index
    %c0_53 = arith.constant 0 : index
    %c0_54 = arith.constant 0 : index
    %109 = vector.load %arg4[%c0_51, %c1_52, %c0_53, %c0_54] : memref<1x4x8x288xf32, #tpu.memory_space<vmem>>, vector<1x1x8x288xf32>
    %110 = vector.shape_cast %109 : vector<1x1x8x288xf32> to vector<8x288xf32>
    %111 = vector.shape_cast %108 : vector<8x288xf32> to vector<1x1x8x288xf32>
    tpu.vector_store %arg4[%c0_51, %c1_52, %c0_53, %c0_54], %111 {strides = array<i32>} : memref<1x4x8x288xf32, #tpu.memory_space<vmem>>, vector<1x1x8x288xf32>,
    %c0_55 = arith.constant 0 : index
    %c2_56 = arith.constant 2 : index
    %c0_57 = arith.constant 0 : index
    %c0_58 = arith.constant 0 : index
    %112 = vector.load %arg4[%c0_55, %c2_56, %c0_57, %c0_58] : memref<1x4x8x288xf32, #tpu.memory_space<vmem>>, vector<1x1x8x288xf32>
    %113 = vector.shape_cast %112 : vector<1x1x8x288xf32> to vector<8x288xf32>
    %114 = vector.broadcast %80 : vector<8x1xf32> to vector<8x288xf32>
    %115 = arith.subf %113, %114 : vector<8x288xf32>
    %116 = vector.broadcast %89 : vector<8x1xf32> to vector<8x288xf32>
    %117 = arith.mulf %115, %116 : vector<8x288xf32>
    %cst_59 = arith.constant 0.000000e+00 : f32
    %118 = vector.broadcast %cst_59 : f32 to vector<8x288xf32>
    %119 = arith.maximumf %117, %118 : vector<8x288xf32>
    %c0_60 = arith.constant 0 : index
    %c2_61 = arith.constant 2 : index
    %c0_62 = arith.constant 0 : index
    %c0_63 = arith.constant 0 : index
    %120 = vector.load %arg4[%c0_60, %c2_61, %c0_62, %c0_63] : memref<1x4x8x288xf32, #tpu.memory_space<vmem>>, vector<1x1x8x288xf32>
    %121 = vector.shape_cast %120 : vector<1x1x8x288xf32> to vector<8x288xf32>
    %122 = vector.shape_cast %119 : vector<8x288xf32> to vector<1x1x8x288xf32>
    tpu.vector_store %arg4[%c0_60, %c2_61, %c0_62, %c0_63], %122 {strides = array<i32>} : memref<1x4x8x288xf32, #tpu.memory_space<vmem>>, vector<1x1x8x288xf32>,
    %c0_64 = arith.constant 0 : index
    %c3_65 = arith.constant 3 : index
    %c0_66 = arith.constant 0 : index
    %c0_67 = arith.constant 0 : index
    %123 = vector.load %arg4[%c0_64, %c3_65, %c0_66, %c0_67] : memref<1x4x8x288xf32, #tpu.memory_space<vmem>>, vector<1x1x8x288xf32>
    %124 = vector.shape_cast %123 : vector<1x1x8x288xf32> to vector<8x288xf32>
    %125 = vector.broadcast %80 : vector<8x1xf32> to vector<8x288xf32>
    %126 = arith.subf %124, %125 : vector<8x288xf32>
    %127 = vector.broadcast %89 : vector<8x1xf32> to vector<8x288xf32>
    %128 = arith.mulf %126, %127 : vector<8x288xf32>
    %cst_68 = arith.constant 0.000000e+00 : f32
    %129 = vector.broadcast %cst_68 : f32 to vector<8x288xf32>
    %130 = arith.maximumf %128, %129 : vector<8x288xf32>
    %c0_69 = arith.constant 0 : index
    %c3_70 = arith.constant 3 : index
    %c0_71 = arith.constant 0 : index
    %c0_72 = arith.constant 0 : index
    %131 = vector.load %arg4[%c0_69, %c3_70, %c0_71, %c0_72] : memref<1x4x8x288xf32, #tpu.memory_space<vmem>>, vector<1x1x8x288xf32>
    %132 = vector.shape_cast %131 : vector<1x1x8x288xf32> to vector<8x288xf32>
    %133 = vector.shape_cast %130 : vector<8x288xf32> to vector<1x1x8x288xf32>
    tpu.vector_store %arg4[%c0_69, %c3_70, %c0_71, %c0_72], %133 {strides = array<i32>} : memref<1x4x8x288xf32, #tpu.memory_space<vmem>>, vector<1x1x8x288xf32>,
    return
  }
  func.func @transform_0(%arg0: i32) -> (i32, i32, i32) {
    %c0_i32 = arith.constant 0 : i32
    %c0_i32_0 = arith.constant 0 : i32
    %c0_i32_1 = arith.constant 0 : i32
    return %arg0, %c0_i32, %c0_i32_0 : i32, i32, i32
  }
  func.func @transform_1(%arg0: i32) -> (i32, i32, i32) {
    %c0_i32 = arith.constant 0 : i32
    %c0_i32_0 = arith.constant 0 : i32
    %c0_i32_1 = arith.constant 0 : i32
    %c0_i32_2 = arith.constant 0 : i32
    return %c0_i32, %c0_i32_0, %c0_i32_1 : i32, i32, i32
  }
  func.func @transform_2(%arg0: i32) -> (i32, i32) {
    %c0_i32 = arith.constant 0 : i32
    %c0_i32_0 = arith.constant 0 : i32
    %c0_i32_1 = arith.constant 0 : i32
    return %c0_i32, %c0_i32_0 : i32, i32
  }
  func.func @transform_3(%arg0: i32) -> (i32, i32, i32, i32) {
    %c0_i32 = arith.constant 0 : i32
    %c0_i32_0 = arith.constant 0 : i32
    %c0_i32_1 = arith.constant 0 : i32
    %c0_i32_2 = arith.constant 0 : i32
    return %arg0, %c0_i32, %c0_i32_0, %c0_i32_1 : i32, i32, i32, i32
  }
}

</mosaic_0001>

<llo_original>
// kernel: tpu_custom_call.1
$region0: #{tpu_custom_call.1}
  #allocation0 [shape = 'u32[]', space=smem, size = 0x4, offset = 0x4, fixed_abs, tag = 'smem constant byte address 0x4 - core index']
  #allocation1 [shape = 'u32[72,128]{1,0:T(1,128)}', space=vmem, size = 0x9000, scoped, tag = 'internal scratch']
  %s0 = inlined_call_operand.hbm [shape: bf16[2,4,326], index: 0, kind: input, shape index: {}]
  %s1 = inlined_call_operand.hbm [shape: bf16[4,8,16], index: 1, kind: input, shape index: {}]
  %s2 = inlined_call_operand.hbm [shape: f32[1,288], index: 2, kind: input, shape index: {}]
  %s3 = inlined_call_operand.hbm [shape: f32[2,4,8,288], index: 3, kind: output, shape index: {}]
  %s4 = sld [smem:[#allocation0]]
  $region57: #{tpu_custom_call.1} parent=0
    _
  %s6 = ssub.s32 1, %s4
  %s7 = scalar_select 0, %s6, %s4
  $region1: #{tpu_custom_call.1} parent=0
    #allocation2 [shape = 'u8[6144]{0}', space=vmem, size = 0x1800, scoped, tag = 'input window, operand 0']
    #allocation3 [shape = 's32[2]{0}', space=sflag, size = 0x8, scoped, tag = 'scoped memory for tpu_custom_call.1']
    #allocation4 [shape = 's32[2]{0}', space=sflag, size = 0x8, scoped, tag = 'scoped memory for tpu_custom_call.1']
    #allocation5 [shape = 'u8[8192]{0}', space=vmem, size = 0x2000, scoped, tag = 'input window, operand 1, single buffered']
    #allocation6 [shape = 's32[1]{0}', space=sflag, size = 0x4, scoped, tag = 'scoped memory for tpu_custom_call.1']
    #allocation7 [shape = 'u8[1536]{0}', space=vmem, size = 0x800, scoped, tag = 'input window, operand 2, single buffered']
    #allocation8 [shape = 'u8[98304]{0}', space=vmem, size = 0x18000, scoped, tag = 'output window, operand 0']
    %8 = vsyncpa [#allocation3], 0
    %s9 = scalar_lea.sflag [#allocation3], 1
    %10 = vsyncpa %s9, 0
    %11 = vsyncpa [#allocation6], 0
    %12 = vsyncpa [#allocation4], 0
    %s13 = scalar_lea.sflag [#allocation4], 1
    %14 = vsyncpa %s13, 0
    loop: start=0, step=1, limit=4
    $region2: #{tpu_custom_call.1} parent=1 // loop_pre_header
      _
    $region3: #{tpu_custom_call.1} parent=1 // loop_header
      %s16 = sphi 0, %s20
      %p17 = scmp.ge.s32.totalorder %s16, 4
      %s26 = sphi 0, %s28
      %s29 = sphi 0, %s26
      %s30 = sphi 0, %s29
      %s46 = sphi 0, %s30
      %s50 = sphi 0, %s50
      %s52 = sphi 0, %s50
      %s53 = sphi 0, %s52
      %s67 = sphi 0, %s53
      %s71 = sphi 0, %s71
      %s73 = sphi 0, %s71
      %s74 = sphi 0, %s73
      %s88 = sphi 0, %s74
      %s94 = sphi 0, %s96
      %s97 = sphi 0, %s94
      %s98 = sphi 0, %s97
      %s114 = sphi 0, %s98
    $region4: #{tpu_custom_call.1} parent=1 // loop_header_branch
      %19 = sbr.rel (%p17) target = $region8
    $region5: #{tpu_custom_call.1} parent=1 // loop_body
      %s21 = ssub.s32 %s16, 1
      %s22 = ssub.s32 %s16, 2
      %s23 = sadd.s32 %s16, 1
      %s24 = ssub.s32 %s16, %s23
      %p25 = scmp.eq.s32.totalorder %s24, 0
      %s27 = sadd.s32 %s26, 1
      %s28 = scalar_select %p25, %s26, %s27
      %p31 = pneg %p25
      %p32 = scmp.eq.s32.totalorder %s16, 1
      %p33 = por %p31, %p32
      %p34 = scmp.ne.s32.totalorder %s26, %s29
      %p35 = scmp.eq.s32.totalorder %s16, 0
      %p36 = por %p34, %p35
      %p37 = scmp.ne.s32.totalorder %s26, %s29
      %p38 = scmp.eq.s32.totalorder %s21, 1
      %p39 = por %p37, %p38
      %p40 = scmp.ne.s32.totalorder %s29, %s30
      %p41 = scmp.eq.s32.totalorder %s21, 0
      %p42 = por %p40, %p41
      %p43 = scmp.ne.s32.totalorder %s29, %s30
      %p44 = scmp.eq.s32.totalorder %s22, 1
      %p45 = por %p43, %p44
      %p47 = scmp.ne.s32.totalorder %s30, %s46
      %p48 = scmp.eq.s32.totalorder %s22, 0
      %p49 = por %p47, %p48
      %s51 = sadd.s32 %s50, 1
      %p54 = scmp.eq.s32.totalorder %s16, 1
      %p55 = scmp.ne.s32.totalorder %s50, %s52
      %p56 = scmp.eq.s32.totalorder %s16, 0
      %p57 = por %p55, %p56
      %p58 = scmp.ne.s32.totalorder %s50, %s52
      %p59 = scmp.eq.s32.totalorder %s21, 1
      %p60 = por %p58, %p59
      %p61 = scmp.ne.s32.totalorder %s52, %s53
      %p62 = scmp.eq.s32.totalorder %s21, 0
      %p63 = por %p61, %p62
      %p64 = scmp.ne.s32.totalorder %s52, %s53
      %p65 = scmp.eq.s32.totalorder %s22, 1
      %p66 = por %p64, %p65
      %p68 = scmp.ne.s32.totalorder %s53, %s67
      %p69 = scmp.eq.s32.totalorder %s22, 0
      %p70 = por %p68, %p69
      %s72 = sadd.s32 %s71, 1
      %p75 = scmp.eq.s32.totalorder %s16, 1
      %p76 = scmp.ne.s32.totalorder %s71, %s73
      %p77 = scmp.eq.s32.totalorder %s16, 0
      %p78 = por %p76, %p77
      %p79 = scmp.ne.s32.totalorder %s71, %s73
      %p80 = scmp.eq.s32.totalorder %s21, 1
      %p81 = por %p79, %p80
      %p82 = scmp.ne.s32.totalorder %s73, %s74
      %p83 = scmp.eq.s32.totalorder %s21, 0
      %p84 = por %p82, %p83
      %p85 = scmp.ne.s32.totalorder %s73, %s74
      %p86 = scmp.eq.s32.totalorder %s22, 1
      %p87 = por %p85, %p86
      %p89 = scmp.ne.s32.totalorder %s74, %s88
      %p90 = scmp.eq.s32.totalorder %s22, 0
      %p91 = por %p89, %p90
      %s92 = ssub.s32 %s16, %s23
      %p93 = scmp.eq.s32.totalorder %s92, 0
      %s95 = sadd.s32 %s94, 1
      %s96 = scalar_select %p93, %s94, %s95
      %p99 = pneg %p93
      %p100 = scmp.eq.s32.totalorder %s16, 1
      %p101 = por %p99, %p100
      %p102 = scmp.ne.s32.totalorder %s94, %s97
      %p103 = scmp.eq.s32.totalorder %s16, 0
      %p104 = por %p102, %p103
      %p105 = scmp.ne.s32.totalorder %s94, %s97
      %p106 = scmp.eq.s32.totalorder %s21, 1
      %p107 = por %p105, %p106
      %p108 = scmp.ne.s32.totalorder %s97, %s98
      %p109 = scmp.eq.s32.totalorder %s21, 0
      %p110 = por %p108, %p109
      %p111 = scmp.ne.s32.totalorder %s97, %s98
      %p112 = scmp.eq.s32.totalorder %s22, 1
      %p113 = por %p111, %p112
      %p115 = scmp.ne.s32.totalorder %s98, %s114
      %p116 = scmp.eq.s32.totalorder %s22, 0
      %p117 = por %p115, %p116
      %p118 = scmp.le.s32.totalorder 1, %s16
      %p119 = scmp.lt.s32.totalorder %s16, 3
      %p120 = pnand %p118, %p119
      %p121 = pneg %p120
      // Predicated region
      $region9: #{tpu_custom_call.1} parent=5 // pred_check
        _
      $region10: #{tpu_custom_call.1} parent=5 // pred_check_branch
        %123 = sbr.rel (%p120) target = $region12
      $region11: #{tpu_custom_call.1} parent=5 // pred_region
        %s124 = ssub.s32 %s16, 1
        // Predicated region
        $region13: #{tpu_custom_call.1} parent=11 // pred_check
          %p125 = pneg %p63
        $region14: #{tpu_custom_call.1} parent=11 // pred_check_branch
          %127 = sbr.rel (%p125) target = $region16
        $region15: #{tpu_custom_call.1} parent=11 // pred_region
          %129 = vsyncadd [#allocation6], 0
          %s130 = sshll.u32 %s1, 4
          %s131 = int_to_ptr.hbm [resolvable:$true] %s130
          %s132 = sshll.u32 [#allocation5], 4
          %s133 = int_to_ptr.vmem [resolvable:$true] %s132
          %138 = dma.hbm_to_vmem [thread:$0]  %s131, 256, %s133, [#allocation6], 64, 64, 4
        $region16: #{tpu_custom_call.1} parent=11 // pred_fallthru
          _
        // Predicated region
        $region17: #{tpu_custom_call.1} parent=11 // pred_check
          %p139 = pneg %p84
        $region18: #{tpu_custom_call.1} parent=11 // pred_check_branch
          %141 = sbr.rel (%p139) target = $region20
        $region19: #{tpu_custom_call.1} parent=11 // pred_region
          %143 = vsyncadd [#allocation6], 0
          %s145 = sshll.u32 %s2, 4
          %s146 = int_to_ptr.hbm [resolvable:$true] %s145
          %s147 = sshll.u32 [#allocation7], 4
          %s148 = int_to_ptr.vmem [resolvable:$true] %s147
          %150 = dma.hbm_to_vmem [thread:$0]  %s146, 48, %s148, [#allocation6]
        $region20: #{tpu_custom_call.1} parent=11 // pred_fallthru
          _
      $region12: #{tpu_custom_call.1} parent=5 // pred_fallthru
        _
      %p151 = scmp.lt.s32.totalorder %s16, 2
      // Predicated region
      $region21: #{tpu_custom_call.1} parent=5 // pred_check
        %p152 = pneg %p151
      $region22: #{tpu_custom_call.1} parent=5 // pred_check_branch
        %154 = sbr.rel (%p152) target = $region24
      $region23: #{tpu_custom_call.1} parent=5 // pred_region
        // Predicated region
        $region25: #{tpu_custom_call.1} parent=23 // pred_check
          %p155 = pneg %p36
        $region26: #{tpu_custom_call.1} parent=23 // pred_check_branch
          %157 = sbr.rel (%p155) target = $region28
        $region27: #{tpu_custom_call.1} parent=23 // pred_region
          %s158 = sand.u32 %s26, 1
          %s159 = scalar_lea.sflag [#allocation3], %s158
          %s160 = sand.u32 %s26, 1
          %s161 = smul.addr %s160, 6
          %s162 = scalar_lea.vmem [#allocation2], %s161
          %164 = vsyncadd %s159, 0
          %s165 = smul.addr %s16, 3
          %s166 = smul.addr %s165, 2
          %s167 = scalar_lea.hbm %s0, %s166
          %s169 = sshll.u32 %s167, 4
          %s170 = int_to_ptr.hbm [resolvable:$true] %s169
          %s171 = sshll.u32 %s162, 4
          %s172 = int_to_ptr.vmem [resolvable:$true] %s171
          %174 = dma.hbm_to_vmem [thread:$0]  %s170, 96, %s172, %s159
        $region28: #{tpu_custom_call.1} parent=23 // pred_fallthru
          _
      $region24: #{tpu_custom_call.1} parent=5 // pred_fallthru
        _
      %p175 = scmp.le.s32.totalorder 1, %s16
      %p176 = scmp.lt.s32.totalorder %s16, 3
      %p177 = pnand %p175, %p176
      %p178 = pneg %p177
      // Predicated region
      $region29: #{tpu_custom_call.1} parent=5 // pred_check
        _
      $region30: #{tpu_custom_call.1} parent=5 // pred_check_branch
        %180 = sbr.rel (%p177) target = $region32
      $region31: #{tpu_custom_call.1} parent=5 // pred_region
        %s181 = ssub.s32 %s16, 1
        %s182 = sand.u32 %s29, 1
        %s183 = scalar_lea.sflag [#allocation3], %s182
        %s184 = sand.u32 %s29, 1
        %s185 = smul.addr %s184, 6
        %s186 = scalar_lea.vmem [#allocation2], %s185
        // Predicated region
        $region33: #{tpu_custom_call.1} parent=31 // pred_check
          %p187 = pneg %p42
        $region34: #{tpu_custom_call.1} parent=31 // pred_check_branch
          %189 = sbr.rel (%p187) target = $region36
        $region35: #{tpu_custom_call.1} parent=31 // pred_region
          %191 = dma.done %s183, 96
        $region36: #{tpu_custom_call.1} parent=31 // pred_fallthru
          _
        // Predicated region
        $region37: #{tpu_custom_call.1} parent=31 // pred_check
          %p192 = pneg %p63
        $region38: #{tpu_custom_call.1} parent=31 // pred_check_branch
          %194 = sbr.rel (%p192) target = $region40
        $region39: #{tpu_custom_call.1} parent=31 // pred_region
          %196 = dma.done [#allocation6], 256
        $region40: #{tpu_custom_call.1} parent=31 // pred_fallthru
          _
        // Predicated region
        $region41: #{tpu_custom_call.1} parent=31 // pred_check
          %p197 = pneg %p84
        $region42: #{tpu_custom_call.1} parent=31 // pred_check_branch
          %199 = sbr.rel (%p197) target = $region44
        $region43: #{tpu_custom_call.1} parent=31 // pred_region
          %201 = dma.done [#allocation6], 48
        $region44: #{tpu_custom_call.1} parent=31 // pred_fallthru
          _
        %s202 = sand.u32 %s29, 1
        %s203 = scalar_lea.sflag [#allocation3], %s202
        %s204 = sand.u32 %s29, 1
        %s205 = smul.addr %s204, 6
        %s206 = scalar_lea.vmem [#allocation2], %s205
        %p207 = pneg %p42
        %p208 = pneg %p39
        %p209 = pneg %p63
        %p210 = pneg %p60
        %p211 = pneg %p84
        %p212 = pneg %p81
        %p213 = pneg %p110
        %p214 = pneg %p107
        %s215 = sand.u32 %s97, 1
        %s216 = scalar_lea.sflag [#allocation4], %s215
        %s217 = sand.u32 %s97, 1
        %s218 = smul.addr %s217, 96
        %s219 = scalar_lea.vmem [#allocation8], %s218
        %v221 = vld [vmem:[%s186] sm:$0x3f]
        %v222 = vld [vmem:[#allocation5] sm:$0xf]
        %v223 = vld [vmem:[#allocation5 + $0x4] sm:$0xf]
        %v224 = vld [vmem:[#allocation5 + $0x8] sm:$0xf]
        %v225 = vld [vmem:[#allocation5 + $0xc] sm:$0xf]
        %v226 = vld [vmem:[#allocation7] sm:$0x7]
        %228 = vst [vmem:[#allocation1] ss:$4 sm:$0xff] %v221
        %v229 = vld.sshfl [vmem:[#allocation1] sm:$0xff pattern:$0x73625140]
        %v230 = vld.sshfl [vmem:[#allocation1 + $0x8] sm:$0xff pattern:$0x73625140]
        %v231 = vld.sshfl [vmem:[#allocation1 + $0x10] sm:$0xff pattern:$0x73625140]
        %s232 = scalar_lea.vmem [#allocation1], 1
        %233 = vst [vmem:[%s232] ss:$4 sm:$0xff] %v221
        %v234 = vld.sshfl [vmem:[#allocation1] sm:$0xff pattern:$0x73625140]
        %v236 = vld.sshfl [vmem:[#allocation1 + $0x8] sm:$0xff pattern:$0x73625140]
        %v238 = vld.sshfl [vmem:[#allocation1 + $0x10] sm:$0xff pattern:$0x73625140]
        %240 = vrot.lane.b32.xlu0 %v234, 127
        %v241 = vpop.permute.xlu0 %240
        %242 = vrot.lane.b32.xlu0 %v236, 127
        %v243 = vpop.permute.xlu0 %242
        %244 = vrot.lane.b32.xlu0 %v238, 127
        %v245 = vpop.permute.xlu0 %244
        %vm246 = vcmask 1039360
        %v247 = vsel %vm246, %v241, %v243
        %v248 = vsel %vm246, %v243, %v245
        %s249 = scalar_lea.vmem [#allocation1], 2
        %250 = vst [vmem:[%s249] ss:$4 sm:$0xff] %v221
        %v251 = vld.sshfl [vmem:[#allocation1] sm:$0xff pattern:$0x73625140]
        %v253 = vld.sshfl [vmem:[#allocation1 + $0x8] sm:$0xff pattern:$0x73625140]
        %v255 = vld.sshfl [vmem:[#allocation1 + $0x10] sm:$0xff pattern:$0x73625140]
        %257 = vrot.lane.b32.xlu0 %v251, 110
        %v258 = vpop.permute.xlu0 %257
        %259 = vrot.lane.b32.xlu0 %v253, 110
        %v260 = vpop.permute.xlu0 %259
        %261 = vrot.lane.b32.xlu0 %v255, 110
        %v262 = vpop.permute.xlu0 %261
        %vm263 = vcmask 900096
        %v264 = vsel %vm263, %v258, %v260
        %v265 = vsel %vm263, %v260, %v262
        %s266 = scalar_lea.vmem [#allocation1], 3
        %267 = vst [vmem:[%s266] ss:$4 sm:$0xff] %v221
        %v268 = vld.sshfl [vmem:[#allocation1] sm:$0xff pattern:$0x73625140]
        %v270 = vld.sshfl [vmem:[#allocation1 + $0x8] sm:$0xff pattern:$0x73625140]
        %v272 = vld.sshfl [vmem:[#allocation1 + $0x10] sm:$0xff pattern:$0x73625140]
        %274 = vrot.lane.b32.xlu0 %v268, 109
        %v275 = vpop.permute.xlu0 %274
        %276 = vrot.lane.b32.xlu0 %v270, 109
        %v277 = vpop.permute.xlu0 %276
        %278 = vrot.lane.b32.xlu0 %v272, 109
        %v279 = vpop.permute.xlu0 %278
        %vm280 = vcmask 891904
        %v281 = vsel %vm280, %v275, %v277
        %v282 = vsel %vm280, %v277, %v279
        %vm283 = vcmask 1041408
        %v285 = vsel %vm283, %v229, %v247
        %v287 = vsel %vm283, %v230, %v248
        %v289 = vsel %vm283, %v231, %v245
        %vm290 = vcmask 1043456
        %v292 = vsel %vm290, %v285, %v264
        %v294 = vsel %vm290, %v287, %v265
        %v296 = vsel %vm290, %v289, %v262
        %vm297 = vcmask 1045504
        %v299 = vsel %vm297, %v292, %v281
        %v302 = vsel %vm297, %v294, %v282
        %v305 = vsel %vm297, %v296, %v279
        %vm307 = vcmask 130048
        %v309 = vsel %vm307, %v222, 0
        %311 = vmatpush.bf16.msra.mxu0 0
        %312 = vmatpush.bf16.msra.mxu0 0
        %313 = vmatpush.bf16.msra.mxu0 0
        %314 = vmatpush.bf16.msra.mxu0 0
        %315 = vmatpush.bf16.msra.mxu0 0
        %316 = vmatpush.bf16.msra.mxu0 0
        %317 = vmatpush.bf16.msra.mxu0 0
        %318 = vmatpush.bf16.msra.mxu0 %v299
        %319 = vmatmul.bf16.gmra.mxu0 %v309
        %v320 = vpop.f32.mrf.mxu0
        %v321 = vadd.f32 0.0, %v320
        %v322 = vpop.f32.mrf.mxu0
        %323 = vdwg.mxu0
        %324 = vmatpush.bf16.msra.mxu0 0
        %325 = vmatpush.bf16.msra.mxu0 0
        %326 = vmatpush.bf16.msra.mxu0 0
        %327 = vmatpush.bf16.msra.mxu0 0
        %328 = vmatpush.bf16.msra.mxu0 0
        %329 = vmatpush.bf16.msra.mxu0 0
        %330 = vmatpush.bf16.msra.mxu0 0
        %331 = vmatpush.bf16.msra.mxu0 %v302
        %332 = vmatmul.bf16.gmra.mxu0 %v309
        %v333 = vpop.f32.mrf.mxu0
        %v334 = vadd.f32 0.0, %v333
        %v335 = vpop.f32.mrf.mxu0
        %336 = vdwg.mxu0
        %337 = vmatpush.bf16.msra.mxu0 0
        %338 = vmatpush.bf16.msra.mxu0 0
        %339 = vmatpush.bf16.msra.mxu0 0
        %340 = vmatpush.bf16.msra.mxu0 0
        %341 = vmatpush.bf16.msra.mxu0 0
        %342 = vmatpush.bf16.msra.mxu0 0
        %343 = vmatpush.bf16.msra.mxu0 0
        %344 = vmatpush.bf16.msra.mxu0 %v305
        %345 = vmatmul.bf16.gmra.mxu0 %v309
        %v346 = vpop.f32.mrf.mxu0
        %v347 = vadd.f32 0.0, %v346
        %v348 = vpop.f32.mrf.mxu0
        %349 = vdwg.mxu0
        %v351 = vperm.slane %v226, 0
        %v352 = vperm.slane %v226, 1
        %v353 = vperm.slane %v226, 2
        %v357 = vmul.f32 %v321, %v351
        %v358 = vmul.f32 %v334, %v352
        %v359 = vmul.f32 %v347, %v353
        %v360 = vadd.f32 %v357, %v358
        %vm361 = vcmask 261120
        %v362 = vsel %vm361, %v359, 0.0
        %v363 = vadd.f32 %v360, %v362
        %364 = vadd.xlane.f32.xlu0 %v363
        %v365 = vpop.xlane.xlu0 %364
        %v366 = vadd.f32 %v365, 0.0
        %v367 = vmul.f32 %v357, %v321
        %v368 = vmul.f32 %v358, %v334
        %v369 = vmul.f32 %v359, %v347
        %v370 = vadd.f32 %v367, %v368
        %v371 = vsel %vm361, %v369, 0.0
        %v372 = vadd.f32 %v370, %v371
        %373 = vadd.xlane.f32.xlu0 %v372
        %v374 = vpop.xlane.xlu0 %373
        %v375 = vadd.f32 %v374, 0.0
        %376 = vst [vmem:[%s219] sm:$0xff] %v321
        %377 = vst [vmem:[%s219 + $0x8] sm:$0xff] %v334
        %378 = vst.msk [vmem:[%s219 + $0x10] sm:$0xff] %vm361, %v347
        %379 = vst [vmem:[#allocation1] ss:$4 sm:$0xff] %v221
        %v380 = vld.sshfl [vmem:[#allocation1] sm:$0xff pattern:$0x73625140]
        %v381 = vld.sshfl [vmem:[#allocation1 + $0x8] sm:$0xff pattern:$0x73625140]
        %v382 = vld.sshfl [vmem:[#allocation1 + $0x10] sm:$0xff pattern:$0x73625140]
        %s383 = scalar_lea.vmem [#allocation1], 1
        %384 = vst [vmem:[%s383] ss:$4 sm:$0xff] %v221
        %v385 = vld.sshfl [vmem:[#allocation1] sm:$0xff pattern:$0x73625140]
        %v387 = vld.sshfl [vmem:[#allocation1 + $0x8] sm:$0xff pattern:$0x73625140]
        %v389 = vld.sshfl [vmem:[#allocation1 + $0x10] sm:$0xff pattern:$0x73625140]
        %391 = vrot.lane.b32.xlu0 %v385, 127
        %v392 = vpop.permute.xlu0 %391
        %393 = vrot.lane.b32.xlu0 %v387, 127
        %v394 = vpop.permute.xlu0 %393
        %395 = vrot.lane.b32.xlu0 %v389, 127
        %v396 = vpop.permute.xlu0 %395
        %v397 = vsel %vm246, %v392, %v394
        %v398 = vsel %vm246, %v394, %v396
        %s399 = scalar_lea.vmem [#allocation1], 2
        %400 = vst [vmem:[%s399] ss:$4 sm:$0xff] %v221
        %v401 = vld.sshfl [vmem:[#allocation1] sm:$0xff pattern:$0x73625140]
        %v403 = vld.sshfl [vmem:[#allocation1 + $0x8] sm:$0xff pattern:$0x73625140]
        %v405 = vld.sshfl [vmem:[#allocation1 + $0x10] sm:$0xff pattern:$0x73625140]
        %407 = vrot.lane.b32.xlu0 %v401, 110
        %v408 = vpop.permute.xlu0 %407
        %409 = vrot.lane.b32.xlu0 %v403, 110
        %v410 = vpop.permute.xlu0 %409
        %411 = vrot.lane.b32.xlu0 %v405, 110
        %v412 = vpop.permute.xlu0 %411
        %v413 = vsel %vm263, %v408, %v410
        %v414 = vsel %vm263, %v410, %v412
        %s415 = scalar_lea.vmem [#allocation1], 3
        %416 = vst [vmem:[%s415] ss:$4 sm:$0xff] %v221
        %v417 = vld.sshfl [vmem:[#allocation1] sm:$0xff pattern:$0x73625140]
        %v419 = vld.sshfl [vmem:[#allocation1 + $0x8] sm:$0xff pattern:$0x73625140]
        %v421 = vld.sshfl [vmem:[#allocation1 + $0x10] sm:$0xff pattern:$0x73625140]
        %423 = vrot.lane.b32.xlu0 %v417, 109
        %v424 = vpop.permute.xlu0 %423
        %425 = vrot.lane.b32.xlu0 %v419, 109
        %v426 = vpop.permute.xlu0 %425
        %427 = vrot.lane.b32.xlu0 %v421, 109
        %v428 = vpop.permute.xlu0 %427
        %v429 = vsel %vm280, %v424, %v426
        %v430 = vsel %vm280, %v426, %v428
        %v432 = vsel %vm283, %v380, %v397
        %v434 = vsel %vm283, %v381, %v398
        %v436 = vsel %vm283, %v382, %v396
        %v438 = vsel %vm290, %v432, %v413
        %v440 = vsel %vm290, %v434, %v414
        %v442 = vsel %vm290, %v436, %v412
        %v444 = vsel %vm297, %v438, %v429
        %v446 = vsel %vm297, %v440, %v430
        %v448 = vsel %vm297, %v442, %v428
        %452 = vrot.lane.b32.xlu0 %v444, 127
        %v453 = vpop.permute.xlu0 %452
        %454 = vrot.lane.b32.xlu0 %v446, 127
        %v455 = vpop.permute.xlu0 %454
        %456 = vrot.lane.b32.xlu0 %v448, 127
        %v457 = vpop.permute.xlu0 %456
        %v458 = vsel %vm246, %v453, %v455
        %v459 = vsel %vm246, %v455, %v457
        %v464 = vsel %vm307, %v223, 0
        %466 = vmatpush.bf16.msra.mxu0 0
        %467 = vmatpush.bf16.msra.mxu0 0
        %468 = vmatpush.bf16.msra.mxu0 0
        %469 = vmatpush.bf16.msra.mxu0 0
        %470 = vmatpush.bf16.msra.mxu0 0
        %471 = vmatpush.bf16.msra.mxu0 0
        %472 = vmatpush.bf16.msra.mxu0 0
        %473 = vmatpush.bf16.msra.mxu0 %v458
        %474 = vmatmul.bf16.gmra.mxu0 %v464
        %v475 = vpop.f32.mrf.mxu0
        %v476 = vadd.f32 0.0, %v475
        %v477 = vpop.f32.mrf.mxu0
        %478 = vdwg.mxu0
        %479 = vmatpush.bf16.msra.mxu0 0
        %480 = vmatpush.bf16.msra.mxu0 0
        %481 = vmatpush.bf16.msra.mxu0 0
        %482 = vmatpush.bf16.msra.mxu0 0
        %483 = vmatpush.bf16.msra.mxu0 0
        %484 = vmatpush.bf16.msra.mxu0 0
        %485 = vmatpush.bf16.msra.mxu0 0
        %486 = vmatpush.bf16.msra.mxu0 %v459
        %487 = vmatmul.bf16.gmra.mxu0 %v464
        %v488 = vpop.f32.mrf.mxu0
        %v489 = vadd.f32 0.0, %v488
        %v490 = vpop.f32.mrf.mxu0
        %491 = vdwg.mxu0
        %492 = vmatpush.bf16.msra.mxu0 0
        %493 = vmatpush.bf16.msra.mxu0 0
        %494 = vmatpush.bf16.msra.mxu0 0
        %495 = vmatpush.bf16.msra.mxu0 0
        %496 = vmatpush.bf16.msra.mxu0 0
        %497 = vmatpush.bf16.msra.mxu0 0
        %498 = vmatpush.bf16.msra.mxu0 0
        %499 = vmatpush.bf16.msra.mxu0 %v457
        %500 = vmatmul.bf16.gmra.mxu0 %v464
        %v501 = vpop.f32.mrf.mxu0
        %v502 = vadd.f32 0.0, %v501
        %v503 = vpop.f32.mrf.mxu0
        %504 = vdwg.mxu0
        %v505 = vmul.f32 %v476, %v351
        %v506 = vmul.f32 %v489, %v352
        %v507 = vmul.f32 %v502, %v353
        %v508 = vadd.f32 %v505, %v506
        %v509 = vsel %vm361, %v507, 0.0
        %v510 = vadd.f32 %v508, %v509
        %511 = vadd.xlane.f32.xlu0 %v510
        %v512 = vpop.xlane.xlu0 %511
        %v513 = vadd.f32 %v366, %v512
        %v514 = vmul.f32 %v505, %v476
        %v515 = vmul.f32 %v506, %v489
        %v516 = vmul.f32 %v507, %v502
        %v517 = vadd.f32 %v514, %v515
        %v518 = vsel %vm361, %v516, 0.0
        %v519 = vadd.f32 %v517, %v518
        %520 = vadd.xlane.f32.xlu0 %v519
        %v521 = vpop.xlane.xlu0 %520
        %v522 = vadd.f32 %v375, %v521
        %s523 = scalar_lea.vmem %s219, 24 [#allocation8]
        %524 = vst [vmem:[%s523] sm:$0xff] %v476
        %525 = vst [vmem:[%s523 + $0x8] sm:$0xff] %v489
        %526 = vst.msk [vmem:[%s523 + $0x10] sm:$0xff] %vm361, %v502
        %527 = vst [vmem:[#allocation1] ss:$4 sm:$0xff] %v221
        %v528 = vld.sshfl [vmem:[#allocation1] sm:$0xff pattern:$0x73625140]
        %v529 = vld.sshfl [vmem:[#allocation1 + $0x8] sm:$0xff pattern:$0x73625140]
        %v530 = vld.sshfl [vmem:[#allocation1 + $0x10] sm:$0xff pattern:$0x73625140]
        %s531 = scalar_lea.vmem [#allocation1], 1
        %532 = vst [vmem:[%s531] ss:$4 sm:$0xff] %v221
        %v533 = vld.sshfl [vmem:[#allocation1] sm:$0xff pattern:$0x73625140]
        %v535 = vld.sshfl [vmem:[#allocation1 + $0x8] sm:$0xff pattern:$0x73625140]
        %v537 = vld.sshfl [vmem:[#allocation1 + $0x10] sm:$0xff pattern:$0x73625140]
        %539 = vrot.lane.b32.xlu0 %v533, 127
        %v540 = vpop.permute.xlu0 %539
        %541 = vrot.lane.b32.xlu0 %v535, 127
        %v542 = vpop.permute.xlu0 %541
        %543 = vrot.lane.b32.xlu0 %v537, 127
        %v544 = vpop.permute.xlu0 %543
        %v545 = vsel %vm246, %v540, %v542
        %v546 = vsel %vm246, %v542, %v544
        %s547 = scalar_lea.vmem [#allocation1], 2
        %548 = vst [vmem:[%s547] ss:$4 sm:$0xff] %v221
        %v549 = vld.sshfl [vmem:[#allocation1] sm:$0xff pattern:$0x73625140]
        %v551 = vld.sshfl [vmem:[#allocation1 + $0x8] sm:$0xff pattern:$0x73625140]
        %v553 = vld.sshfl [vmem:[#allocation1 + $0x10] sm:$0xff pattern:$0x73625140]
        %555 = vrot.lane.b32.xlu0 %v549, 110
        %v556 = vpop.permute.xlu0 %555
        %557 = vrot.lane.b32.xlu0 %v551, 110
        %v558 = vpop.permute.xlu0 %557
        %559 = vrot.lane.b32.xlu0 %v553, 110
        %v560 = vpop.permute.xlu0 %559
        %v561 = vsel %vm263, %v556, %v558
        %v562 = vsel %vm263, %v558, %v560
        %s563 = scalar_lea.vmem [#allocation1], 3
        %564 = vst [vmem:[%s563] ss:$4 sm:$0xff] %v221
        %v565 = vld.sshfl [vmem:[#allocation1] sm:$0xff pattern:$0x73625140]
        %v567 = vld.sshfl [vmem:[#allocation1 + $0x8] sm:$0xff pattern:$0x73625140]
        %v569 = vld.sshfl [vmem:[#allocation1 + $0x10] sm:$0xff pattern:$0x73625140]
        %571 = vrot.lane.b32.xlu0 %v565, 109
        %v572 = vpop.permute.xlu0 %571
        %573 = vrot.lane.b32.xlu0 %v567, 109
        %v574 = vpop.permute.xlu0 %573
        %575 = vrot.lane.b32.xlu0 %v569, 109
        %v576 = vpop.permute.xlu0 %575
        %v577 = vsel %vm280, %v572, %v574
        %v578 = vsel %vm280, %v574, %v576
        %v580 = vsel %vm283, %v528, %v545
        %v582 = vsel %vm283, %v529, %v546
        %v584 = vsel %vm283, %v530, %v544
        %v586 = vsel %vm290, %v580, %v561
        %v588 = vsel %vm290, %v582, %v562
        %v590 = vsel %vm290, %v584, %v560
        %v592 = vsel %vm297, %v586, %v577
        %v594 = vsel %vm297, %v588, %v578
        %v596 = vsel %vm297, %v590, %v576
        %600 = vrot.lane.b32.xlu0 %v592, 110
        %v601 = vpop.permute.xlu0 %600
        %602 = vrot.lane.b32.xlu0 %v594, 110
        %v603 = vpop.permute.xlu0 %602
        %604 = vrot.lane.b32.xlu0 %v596, 110
        %v605 = vpop.permute.xlu0 %604
        %v606 = vsel %vm263, %v601, %v603
        %v607 = vsel %vm263, %v603, %v605
        %v612 = vsel %vm307, %v224, 0
        %614 = vmatpush.bf16.msra.mxu0 0
        %615 = vmatpush.bf16.msra.mxu0 0
        %616 = vmatpush.bf16.msra.mxu0 0
        %617 = vmatpush.bf16.msra.mxu0 0
        %618 = vmatpush.bf16.msra.mxu0 0
        %619 = vmatpush.bf16.msra.mxu0 0
        %620 = vmatpush.bf16.msra.mxu0 0
        %621 = vmatpush.bf16.msra.mxu0 %v606
        %622 = vmatmul.bf16.gmra.mxu0 %v612
        %v623 = vpop.f32.mrf.mxu0
        %v624 = vadd.f32 0.0, %v623
        %v625 = vpop.f32.mrf.mxu0
        %626 = vdwg.mxu0
        %627 = vmatpush.bf16.msra.mxu0 0
        %628 = vmatpush.bf16.msra.mxu0 0
        %629 = vmatpush.bf16.msra.mxu0 0
        %630 = vmatpush.bf16.msra.mxu0 0
        %631 = vmatpush.bf16.msra.mxu0 0
        %632 = vmatpush.bf16.msra.mxu0 0
        %633 = vmatpush.bf16.msra.mxu0 0
        %634 = vmatpush.bf16.msra.mxu0 %v607
        %635 = vmatmul.bf16.gmra.mxu0 %v612
        %v636 = vpop.f32.mrf.mxu0
        %v637 = vadd.f32 0.0, %v636
        %v638 = vpop.f32.mrf.mxu0
        %639 = vdwg.mxu0
        %640 = vmatpush.bf16.msra.mxu0 0
        %641 = vmatpush.bf16.msra.mxu0 0
        %642 = vmatpush.bf16.msra.mxu0 0
        %643 = vmatpush.bf16.msra.mxu0 0
        %644 = vmatpush.bf16.msra.mxu0 0
        %645 = vmatpush.bf16.msra.mxu0 0
        %646 = vmatpush.bf16.msra.mxu0 0
        %647 = vmatpush.bf16.msra.mxu0 %v605
        %648 = vmatmul.bf16.gmra.mxu0 %v612
        %v649 = vpop.f32.mrf.mxu0
        %v650 = vadd.f32 0.0, %v649
        %v651 = vpop.f32.mrf.mxu0
        %652 = vdwg.mxu0
        %v653 = vmul.f32 %v624, %v351
        %v654 = vmul.f32 %v637, %v352
        %v655 = vmul.f32 %v650, %v353
        %v656 = vadd.f32 %v653, %v654
        %v657 = vsel %vm361, %v655, 0.0
        %v658 = vadd.f32 %v656, %v657
        %659 = vadd.xlane.f32.xlu0 %v658
        %v660 = vpop.xlane.xlu0 %659
        %v661 = vadd.f32 %v513, %v660
        %v662 = vmul.f32 %v653, %v624
        %v663 = vmul.f32 %v654, %v637
        %v664 = vmul.f32 %v655, %v650
        %v665 = vadd.f32 %v662, %v663
        %v666 = vsel %vm361, %v664, 0.0
        %v667 = vadd.f32 %v665, %v666
        %668 = vadd.xlane.f32.xlu0 %v667
        %v669 = vpop.xlane.xlu0 %668
        %v670 = vadd.f32 %v522, %v669
        %s671 = scalar_lea.vmem %s219, 48 [#allocation8]
        %672 = vst [vmem:[%s671] sm:$0xff] %v624
        %673 = vst [vmem:[%s671 + $0x8] sm:$0xff] %v637
        %674 = vst.msk [vmem:[%s671 + $0x10] sm:$0xff] %vm361, %v650
        %675 = vst [vmem:[#allocation1] ss:$4 sm:$0xff] %v221
        %v676 = vld.sshfl [vmem:[#allocation1] sm:$0xff pattern:$0x73625140]
        %v677 = vld.sshfl [vmem:[#allocation1 + $0x8] sm:$0xff pattern:$0x73625140]
        %v678 = vld.sshfl [vmem:[#allocation1 + $0x10] sm:$0xff pattern:$0x73625140]
        %s679 = scalar_lea.vmem [#allocation1], 1
        %680 = vst [vmem:[%s679] ss:$4 sm:$0xff] %v221
        %v681 = vld.sshfl [vmem:[#allocation1] sm:$0xff pattern:$0x73625140]
        %v683 = vld.sshfl [vmem:[#allocation1 + $0x8] sm:$0xff pattern:$0x73625140]
        %v685 = vld.sshfl [vmem:[#allocation1 + $0x10] sm:$0xff pattern:$0x73625140]
        %687 = vrot.lane.b32.xlu0 %v681, 127
        %v688 = vpop.permute.xlu0 %687
        %689 = vrot.lane.b32.xlu0 %v683, 127
        %v690 = vpop.permute.xlu0 %689
        %691 = vrot.lane.b32.xlu0 %v685, 127
        %v692 = vpop.permute.xlu0 %691
        %v693 = vsel %vm246, %v688, %v690
        %v694 = vsel %vm246, %v690, %v692
        %s695 = scalar_lea.vmem [#allocation1], 2
        %696 = vst [vmem:[%s695] ss:$4 sm:$0xff] %v221
        %v697 = vld.sshfl [vmem:[#allocation1] sm:$0xff pattern:$0x73625140]
        %v699 = vld.sshfl [vmem:[#allocation1 + $0x8] sm:$0xff pattern:$0x73625140]
        %v701 = vld.sshfl [vmem:[#allocation1 + $0x10] sm:$0xff pattern:$0x73625140]
        %703 = vrot.lane.b32.xlu0 %v697, 110
        %v704 = vpop.permute.xlu0 %703
        %705 = vrot.lane.b32.xlu0 %v699, 110
        %v706 = vpop.permute.xlu0 %705
        %707 = vrot.lane.b32.xlu0 %v701, 110
        %v708 = vpop.permute.xlu0 %707
        %v709 = vsel %vm263, %v704, %v706
        %v710 = vsel %vm263, %v706, %v708
        %s711 = scalar_lea.vmem [#allocation1], 3
        %712 = vst [vmem:[%s711] ss:$4 sm:$0xff] %v221
        %v713 = vld.sshfl [vmem:[#allocation1] sm:$0xff pattern:$0x73625140]
        %v715 = vld.sshfl [vmem:[#allocation1 + $0x8] sm:$0xff pattern:$0x73625140]
        %v717 = vld.sshfl [vmem:[#allocation1 + $0x10] sm:$0xff pattern:$0x73625140]
        %719 = vrot.lane.b32.xlu0 %v713, 109
        %v720 = vpop.permute.xlu0 %719
        %721 = vrot.lane.b32.xlu0 %v715, 109
        %v722 = vpop.permute.xlu0 %721
        %723 = vrot.lane.b32.xlu0 %v717, 109
        %v724 = vpop.permute.xlu0 %723
        %v725 = vsel %vm280, %v720, %v722
        %v726 = vsel %vm280, %v722, %v724
        %v728 = vsel %vm283, %v676, %v693
        %v730 = vsel %vm283, %v677, %v694
        %v732 = vsel %vm283, %v678, %v692
        %v734 = vsel %vm290, %v728, %v709
        %v736 = vsel %vm290, %v730, %v710
        %v738 = vsel %vm290, %v732, %v708
        %v740 = vsel %vm297, %v734, %v725
        %v742 = vsel %vm297, %v736, %v726
        %v744 = vsel %vm297, %v738, %v724
        %748 = vrot.lane.b32.xlu0 %v740, 109
        %v749 = vpop.permute.xlu0 %748
        %750 = vrot.lane.b32.xlu0 %v742, 109
        %v751 = vpop.permute.xlu0 %750
        %752 = vrot.lane.b32.xlu0 %v744, 109
        %v753 = vpop.permute.xlu0 %752
        %v754 = vsel %vm280, %v749, %v751
        %v755 = vsel %vm280, %v751, %v753
        %v760 = vsel %vm307, %v225, 0
        %762 = vmatpush.bf16.msra.mxu0 0
        %763 = vmatpush.bf16.msra.mxu0 0
        %764 = vmatpush.bf16.msra.mxu0 0
        %765 = vmatpush.bf16.msra.mxu0 0
        %766 = vmatpush.bf16.msra.mxu0 0
        %767 = vmatpush.bf16.msra.mxu0 0
        %768 = vmatpush.bf16.msra.mxu0 0
        %769 = vmatpush.bf16.msra.mxu0 %v754
        %770 = vmatmul.bf16.gmra.mxu0 %v760
        %v771 = vpop.f32.mrf.mxu0
        %v772 = vadd.f32 0.0, %v771
        %v773 = vpop.f32.mrf.mxu0
        %774 = vdwg.mxu0
        %775 = vmatpush.bf16.msra.mxu0 0
        %776 = vmatpush.bf16.msra.mxu0 0
        %777 = vmatpush.bf16.msra.mxu0 0
        %778 = vmatpush.bf16.msra.mxu0 0
        %779 = vmatpush.bf16.msra.mxu0 0
        %780 = vmatpush.bf16.msra.mxu0 0
        %781 = vmatpush.bf16.msra.mxu0 0
        %782 = vmatpush.bf16.msra.mxu0 %v755
        %783 = vmatmul.bf16.gmra.mxu0 %v760
        %v784 = vpop.f32.mrf.mxu0
        %v785 = vadd.f32 0.0, %v784
        %v786 = vpop.f32.mrf.mxu0
        %787 = vdwg.mxu0
        %788 = vmatpush.bf16.msra.mxu0 0
        %789 = vmatpush.bf16.msra.mxu0 0
        %790 = vmatpush.bf16.msra.mxu0 0
        %791 = vmatpush.bf16.msra.mxu0 0
        %792 = vmatpush.bf16.msra.mxu0 0
        %793 = vmatpush.bf16.msra.mxu0 0
        %794 = vmatpush.bf16.msra.mxu0 0
        %795 = vmatpush.bf16.msra.mxu0 %v753
        %796 = vmatmul.bf16.gmra.mxu0 %v760
        %v797 = vpop.f32.mrf.mxu0
        %v798 = vadd.f32 0.0, %v797
        %v799 = vpop.f32.mrf.mxu0
        %800 = vdwg.mxu0
        %v801 = vmul.f32 %v772, %v351
        %v802 = vmul.f32 %v785, %v352
        %v803 = vmul.f32 %v798, %v353
        %v804 = vadd.f32 %v801, %v802
        %v805 = vsel %vm361, %v803, 0.0
        %v806 = vadd.f32 %v804, %v805
        %807 = vadd.xlane.f32.xlu0 %v806
        %v808 = vpop.xlane.xlu0 %807
        %v809 = vadd.f32 %v661, %v808
        %v810 = vmul.f32 %v801, %v772
        %v811 = vmul.f32 %v802, %v785
        %v812 = vmul.f32 %v803, %v798
        %v813 = vadd.f32 %v810, %v811
        %v814 = vsel %vm361, %v812, 0.0
        %v815 = vadd.f32 %v813, %v814
        %816 = vadd.xlane.f32.xlu0 %v815
        %v817 = vpop.xlane.xlu0 %816
        %v818 = vadd.f32 %v670, %v817
        %s819 = scalar_lea.vmem %s219, 72 [#allocation8]
        %820 = vst [vmem:[%s819] sm:$0xff] %v772
        %821 = vst [vmem:[%s819 + $0x8] sm:$0xff] %v785
        %822 = vst.msk [vmem:[%s819 + $0x10] sm:$0xff] %vm361, %v798
        %v823 = vmul.f32 %v809, 0.0009765625
        %v824 = vmul.f32 %v818, 0.0009765625
        %v825 = vmul.f32 %v823, %v823
        %v826 = vsub.f32 %v824, %v825
        %v827 = vmax.f32 %v826, 0.0
        %v828 = vadd.f32 %v827, 1e-05
        %v829 = vrsqrt.pop %v828
        %v830 = vmul.f32 %v829, %v828
        %v831 = vmul.f32 %v830, %v829
        %v832 = vmul.f32 0.5, %v831
        %v833 = vsub.f32 1.5, %v832
        %v834 = vmul.f32 %v829, %v833
        %vm835 = vweird.f32 %v828
        %vm836 = vweird.f32 %v829
        %vm837 = vmor %vm835, %vm836
        %v838 = vsel %vm837, %v829, %v834
        %v839 = vld [vmem:[%s219] sm:$0xff]
        %v840 = vld [vmem:[%s219 + $0x8] sm:$0xff]
        %v841 = vld [vmem:[%s219 + $0x10] sm:$0xff]
        %v842 = vsub.f32 %v839, %v823
        %v843 = vsub.f32 %v840, %v823
        %v844 = vsub.f32 %v841, %v823
        %v845 = vmul.f32 %v842, %v838
        %v846 = vmul.f32 %v843, %v838
        %v847 = vmul.f32 %v844, %v838
        %v848 = vmax.f32 %v845, 0.0
        %v849 = vmax.f32 %v846, 0.0
        %v850 = vmax.f32 %v847, 0.0
        %851 = vst [vmem:[%s219] sm:$0xff] %v848
        %852 = vst [vmem:[%s219 + $0x8] sm:$0xff] %v849
        %853 = vst.msk [vmem:[%s219 + $0x10] sm:$0xff] %vm361, %v850
        %v854 = vld [vmem:[%s523] sm:$0xff]
        %v855 = vld [vmem:[%s523 + $0x8] sm:$0xff]
        %v856 = vld [vmem:[%s523 + $0x10] sm:$0xff]
        %v857 = vsub.f32 %v854, %v823
        %v858 = vsub.f32 %v855, %v823
        %v859 = vsub.f32 %v856, %v823
        %v860 = vmul.f32 %v857, %v838
        %v861 = vmul.f32 %v858, %v838
        %v862 = vmul.f32 %v859, %v838
        %v863 = vmax.f32 %v860, 0.0
        %v864 = vmax.f32 %v861, 0.0
        %v865 = vmax.f32 %v862, 0.0
        %866 = vst [vmem:[%s523] sm:$0xff] %v863
        %867 = vst [vmem:[%s523 + $0x8] sm:$0xff] %v864
        %868 = vst.msk [vmem:[%s523 + $0x10] sm:$0xff] %vm361, %v865
        %v869 = vld [vmem:[%s671] sm:$0xff]
        %v870 = vld [vmem:[%s671 + $0x8] sm:$0xff]
        %v871 = vld [vmem:[%s671 + $0x10] sm:$0xff]
        %v872 = vsub.f32 %v869, %v823
        %v873 = vsub.f32 %v870, %v823
        %v874 = vsub.f32 %v871, %v823
        %v875 = vmul.f32 %v872, %v838
        %v876 = vmul.f32 %v873, %v838
        %v877 = vmul.f32 %v874, %v838
        %v878 = vmax.f32 %v875, 0.0
        %v879 = vmax.f32 %v876, 0.0
        %v880 = vmax.f32 %v877, 0.0
        %881 = vst [vmem:[%s671] sm:$0xff] %v878
        %882 = vst [vmem:[%s671 + $0x8] sm:$0xff] %v879
        %883 = vst.msk [vmem:[%s671 + $0x10] sm:$0xff] %vm361, %v880
        %v884 = vld [vmem:[%s819] sm:$0xff]
        %v885 = vld [vmem:[%s819 + $0x8] sm:$0xff]
        %v886 = vld [vmem:[%s819 + $0x10] sm:$0xff]
        %v887 = vsub.f32 %v884, %v823
        %v888 = vsub.f32 %v885, %v823
        %v889 = vsub.f32 %v886, %v823
        %v890 = vmul.f32 %v887, %v838
        %v891 = vmul.f32 %v888, %v838
        %v892 = vmul.f32 %v889, %v838
        %v893 = vmax.f32 %v890, 0.0
        %v894 = vmax.f32 %v891, 0.0
        %v895 = vmax.f32 %v892, 0.0
        %896 = vst [vmem:[%s819] sm:$0xff] %v893
        %897 = vst [vmem:[%s819 + $0x8] sm:$0xff] %v894
        %898 = vst.msk [vmem:[%s819 + $0x10] sm:$0xff] %vm361, %v895
        %s899 = sand.u32 %s97, 1
        %s900 = scalar_lea.sflag [#allocation4], %s899
        %s901 = sand.u32 %s97, 1
        %s902 = smul.addr %s901, 96
        %s903 = scalar_lea.vmem [#allocation8], %s902
        // Predicated region
        $region45: #{tpu_custom_call.1} parent=31 // pred_check
          %p904 = pneg %p107
        $region46: #{tpu_custom_call.1} parent=31 // pred_check_branch
          %906 = sbr.rel (%p904) target = $region48
        $region47: #{tpu_custom_call.1} parent=31 // pred_region
          %908 = vsyncadd %s900, 0
          %s909 = smul.addr %s21, 12
          %s910 = smul.addr %s909, 8
          %s911 = scalar_lea.hbm %s3, %s910
          %s912 = sshll.u32 %s903, 4
          %s913 = int_to_ptr.vmem [resolvable:$true] %s912
          %s914 = sshll.u32 %s911, 4
          %s915 = int_to_ptr.hbm [resolvable:$true] %s914
          %920 = dma.vmem_to_hbm [thread:$0]  %s913, 1536, %s915, %s900, 384, 384, 24
        $region48: #{tpu_custom_call.1} parent=31 // pred_fallthru
          _
      $region32: #{tpu_custom_call.1} parent=5 // pred_fallthru
        _
      %p921 = scmp.le.s32.totalorder 2, %s16
      // Predicated region
      $region49: #{tpu_custom_call.1} parent=5 // pred_check
        %p922 = pneg %p921
      $region50: #{tpu_custom_call.1} parent=5 // pred_check_branch
        %924 = sbr.rel (%p922) target = $region52
      $region51: #{tpu_custom_call.1} parent=5 // pred_region
        %s925 = ssub.s32 %s16, 2
        // Predicated region
        $region53: #{tpu_custom_call.1} parent=51 // pred_check
          %p926 = pneg %p113
        $region54: #{tpu_custom_call.1} parent=51 // pred_check_branch
          %928 = sbr.rel (%p926) target = $region56
        $region55: #{tpu_custom_call.1} parent=51 // pred_region
          %s929 = sand.u32 %s98, 1
          %s930 = scalar_lea.sflag [#allocation4], %s929
          %s931 = sand.u32 %s98, 1
          %s932 = smul.addr %s931, 96
          %s933 = scalar_lea.vmem [#allocation8], %s932
          %935 = dma.done %s930, 1536
        $region56: #{tpu_custom_call.1} parent=51 // pred_fallthru
          _
      $region52: #{tpu_custom_call.1} parent=5 // pred_fallthru
        _
    $region6: #{tpu_custom_call.1} parent=1 // loop_footer
      %s20 = sadd.s32 1, %s16
    $region7: #{tpu_custom_call.1} parent=1 // loop_footer_branch
      %15 = sbr.rel target = $region3
    $region8: #{tpu_custom_call.1} parent=1 // loop_exit
      _
    %936 = vsyncpa [#allocation3], 1
    %s937 = scalar_lea.sflag [#allocation3], 1
    %938 = vsyncpa %s937, 1
    %939 = vsyncpa [#allocation6], 1
    %940 = vsyncpa [#allocation4], 1
    %s941 = scalar_lea.sflag [#allocation4], 1
    %942 = vsyncpa %s941, 1

</llo_original>
